<compile_context>
chip_gen: v7x
topology: tpu7x:2x2x1
jax: 0.10.0
libtpu: 0.0.40
codegen_flags: <defaults>
</compile_context>

<pallas_src>
import functools

import numpy as np
import jax
import jax.numpy as jnp
from jax import lax
from jax.experimental import pallas as pl
from jax.experimental.pallas import tpu as pltpu

BATCH_SIZE = 2
LATENT_DIM = 4      # channels
NUM_PATCHES = 16    # spatial H = W
NUM_CLASSES = 10
BN_EPS = 1e-5
STRIDES = (1, 2, 2, 2)


# ------------------------------ Pallas kernel ------------------------------ #
def _cnn_forward_kernel(z_ref, w_ref, r_ref, out_ref, *, batch, layers, cls):
    """Single gridless kernel: 4x (Conv3x3 -> ReLU -> BN) + Linear, all on-chip.

    Activation layout: (W*B, C*H) -- width-major, batch-minor rows (sublanes),
    channel-major, height-minor lanes.  `layers`/`cls` are static Python metadata.
    """
    z = z_ref[...].astype(jnp.float32)              # (W_in*B, C*H_in)

    for (stride, rows_in, rows_out, ch_in, ch_out,
         bt_off, s_off, bias_row, scale_row, shift_row) in layers:
        if stride == 1:
            # Width taps kw=0/2 via sublane shift with zero borders (padding=1).
            # No MXU / no im2col: pure data movement, borders zeroed by construction.
            zero = jnp.zeros((batch, ch_in), jnp.float32)
            left = jnp.concatenate([zero, z[:rows_in - batch, :]], axis=0)   # reads iw = ow-1
            right = jnp.concatenate([z[batch:, :], zero], axis=0)            # reads iw = ow+1
            zcat = jnp.concatenate([left, z, right], axis=1)                 # (rows_in, 3*ch_in)
        else:
            # Stride-2 width taps: ONE stacked 0/1 selection matmul for all three kw taps.
            smat = w_ref[s_off:s_off + 3 * rows_out, 0:rows_in]
            sel = jnp.dot(smat, z, preferred_element_type=jnp.float32)       # (3*rows_out, ch_in)
            zcat = jnp.concatenate(
                [sel[k * rows_out:(k + 1) * rows_out, :] for k in range(3)],
                axis=1)                                                       # (rows_out, 3*ch_in)

        # One channel/height-mixing matmul per layer (3 kw taps stacked along K).
        bt = w_ref[bt_off:bt_off + 3 * ch_in, 0:ch_out]
        acc = jnp.dot(zcat, bt, preferred_element_type=jnp.float32)          # (rows_out, ch_out)
        acc = acc + r_ref[bias_row:bias_row + 1, 0:ch_out]                   # conv bias
        z = jnp.maximum(acc, 0.0)                                            # ReLU (Conv->ReLU->BN)
        if scale_row >= 0:                                                   # eval-mode BatchNorm
            z = (z * r_ref[scale_row:scale_row + 1, 0:ch_out]
                 + r_ref[shift_row:shift_row + 1, 0:ch_out])
        # (layer 4: BN folded into the classifier weights below)

    # Fused flatten + BN4 + Linear: one matmul.
    wl_off, wl_rows, k_cls, blin_row, w4, ch4 = cls
    zcls = jnp.concatenate([z[w * batch:(w + 1) * batch, :] for w in range(w4)],
                           axis=1)                                            # (B, w4*ch4)
    wl = w_ref[wl_off:wl_off + wl_rows, 0:k_cls]
    out_ref[...] = (jnp.dot(zcls, wl, preferred_element_type=jnp.float32)
                    + r_ref[blin_row:blin_row + 1, 0:k_cls])                  # (B, K)


# ------------------------- operand precompute (once) ------------------------ #
def _tap_select(n_out, n_in, stride, k):
    """(n_out, n_in) 0/1 matrix: output o reads input stride*o + k - 1 (zero row = padding)."""
    o = np.arange(n_out)[:, None]
    i = np.arange(n_in)[None, :]
    return jnp.asarray((i == stride * o + k - 1).astype(np.float32))


def precompute_operands(params, *, batch=BATCH_SIZE, latent_dim=LATENT_DIM,
                        spatial=NUM_PATCHES):
    """Build the two packed slabs + static metadata.  Runs once per parameter set
    (hoisted out of the per-call forward path)."""
    C = latent_dim
    f32 = jnp.float32

    weight_mats, row_vecs = [], []

    def add_weight(m):
        weight_mats.append(m)
        return len(weight_mats) - 1

    def add_row(v):
        row_vecs.append(v)
        return len(row_vecs) - 1

    raw_layers = []
    h_in = w_in = spatial
    last_scale = last_shift = None
    for l, stride in enumerate(STRIDES, start=1):
        p = params[f"layer{l}"]
        h_out = (h_in - 1) // stride + 1
        w_out = (w_in - 1) // stride + 1

        # Channel/height-mixing matrix, 3 kw taps stacked along rows (the matmul K dim).
        bt_blocks = []
        for kw in range(3):
            bt_kw = jnp.zeros((C * h_in, C * h_out), f32)
            for kh in range(3):
                sel = _tap_select(h_out, h_in, stride, kh)            # (h_out, h_in)
                bt_kw = bt_kw + jnp.kron(p["w"][:, :, kh, kw], sel).T
            bt_blocks.append(bt_kw)
        bt_idx = add_weight(jnp.concatenate(bt_blocks, axis=0))       # (3*C*h_in, C*h_out)

        if stride > 1:
            eye_b = jnp.eye(batch, dtype=f32)
            s_blocks = [jnp.kron(_tap_select(w_out, w_in, stride, kw), eye_b)
                        for kw in range(3)]
            s_idx = add_weight(jnp.concatenate(s_blocks, axis=0))     # (3*w_out*B, w_in*B)
        else:
            s_idx = -1

        bias_idx = add_row(jnp.repeat(p["b"], h_out))
        scale = p["gamma"] * lax.rsqrt(p["rvar"] + BN_EPS)
        shift = p["beta"] - p["rmean"] * scale
        if l < len(STRIDES):
            scale_idx = add_row(jnp.repeat(scale, h_out))
            shift_idx = add_row(jnp.repeat(shift, h_out))
        else:
            scale_idx = shift_idx = -1                                # folded into classifier
            last_scale, last_shift = scale, shift

        raw_layers.append((stride, w_in * batch, w_out * batch, C * h_in, C * h_out,
                           bt_idx, s_idx, bias_idx, scale_idx, shift_idx))
        h_in, w_in = h_out, w_out

    # Classifier: fold layer-4 BN + PyTorch NCHW flatten into one (W4*C*H4, K) matrix.
    lin = params["linear"]
    K = lin["w"].shape[0]
    h4, w4 = h_in, w_in
    wlin4 = lin["w"].reshape(K, C, h4, w4)
    wl = jnp.transpose(wlin4 * last_scale[None, :, None, None],
                       (3, 1, 2, 0)).reshape(w4 * C * h4, K)
    blin = lin["b"] + jnp.sum(wlin4 * last_shift[None, :, None, None], axis=(1, 2, 3))
    wl_idx = add_weight(wl)
    blin_idx = add_row(blin)

    # Pack all weight matrices into ONE slab (8-aligned row offsets, common lane width).
    slab_w = max(int(m.shape[1]) for m in weight_mats)
    offs, padded, cur = [], [], 0
    for m in weight_mats:
        r, c = int(m.shape[0]), int(m.shape[1])
        pad_r = (-r) % 8
        padded.append(jnp.pad(m, ((0, pad_r), (0, slab_w - c))))
        offs.append(cur)
        cur += r + pad_r
    w_slab = jnp.concatenate(padded, axis=0)

    # Pack all per-row (bias / scale / shift / linear-bias) vectors into ONE slab.
    row_w = max(int(v.shape[0]) for v in row_vecs)
    r_slab = jnp.stack([jnp.pad(v, (0, row_w - int(v.shape[0]))) for v in row_vecs], axis=0)

    def woff(i):
        return offs[i] if i >= 0 else -1

    layers_meta = tuple(
        (s, ri, ro, ci, co, woff(bt), woff(si), bi, sci, shi)
        for (s, ri, ro, ci, co, bt, si, bi, sci, shi) in raw_layers)
    cls_meta = (woff(wl_idx), w4 * C * h4, K, blin_idx, w4, C * h4)
    meta = (batch, layers_meta, cls_meta)
    return w_slab, r_slab, meta


# ------------------------------- forward call -------------------------------- #
def cnn_block_forward(x_nchw, w_slab, r_slab, *, meta):
    """Eval-mode forward of CNN_Block, fully fused into a single Pallas kernel."""
    batch, layers, cls = meta
    b, c, h, w = x_nchw.shape
    # Activation layout (W*B, C*H): width-major/batch-minor rows, channel/height lanes.
    z0 = jnp.transpose(x_nchw, (3, 0, 1, 2)).reshape(w * b, c * h)

    kernel = functools.partial(_cnn_forward_kernel, batch=batch, layers=layers, cls=cls)
    vmem = pl.BlockSpec(memory_space=pltpu.MemorySpace.VMEM)
    out = pl.pallas_call(
        kernel,
        out_shape=jax.ShapeDtypeStruct((b, cls[2]), jnp.float32),
        in_specs=[vmem, vmem, vmem],
        out_specs=vmem,
    )(z0, w_slab, r_slab)
    return out                                           # (B, num_classes)


# ------------------------ params / pure-JAX reference ----------------------- #
def init_params(key, latent_dim, num_classes, flatten_dim):
    params = {}
    keys = jax.random.split(key, 5)
    for l in range(1, 5):
        kk = jax.random.split(keys[l - 1], 6)
        params[f"layer{l}"] = dict(
            w=0.1 * jax.random.normal(kk[0], (latent_dim, latent_dim, 3, 3), jnp.float32),
            b=0.05 * jax.random.normal(kk[1], (latent_dim,), jnp.float32),
            gamma=1.0 + 0.1 * jax.random.normal(kk[2], (latent_dim,), jnp.float32),
            beta=0.05 * jax.random.normal(kk[3], (latent_dim,), jnp.float32),
            rmean=0.05 * jax.random.normal(kk[4], (latent_dim,), jnp.float32),
            rvar=1.0 + jax.nn.softplus(jax.random.normal(kk[5], (latent_dim,), jnp.float32)),
        )
    klin = jax.random.split(keys[4], 2)
    params["linear"] = dict(
        w=0.1 * jax.random.normal(klin[0], (num_classes, flatten_dim), jnp.float32),
        b=0.05 * jax.random.normal(klin[1], (num_classes,), jnp.float32),
    )
    return params


def reference_forward(x, params):
    """Pure-JAX reference (eval mode) used only for the correctness check."""
    for l, stride in enumerate(STRIDES, start=1):
        p = params[f"layer{l}"]
        x = lax.conv_general_dilated(
            x, p["w"], window_strides=(stride, stride), padding=((1, 1), (1, 1)),
            dimension_numbers=("NCHW", "OIHW", "NCHW"))
        x = x + p["b"][None, :, None, None]
        x = jnp.maximum(x, 0.0)
        scale = p["gamma"] * lax.rsqrt(p["rvar"] + BN_EPS)
        shift = p["beta"] - p["rmean"] * scale
        x = x * scale[None, :, None, None] + shift[None, :, None, None]
    x = x.reshape(x.shape[0], -1)
    lin = params["linear"]
    return x @ lin["w"].T + lin["b"]


if __name__ == "__main__":
    key = jax.random.PRNGKey(0)
    k_x, k_p = jax.random.split(key)
    x = jax.random.normal(
        k_x, (BATCH_SIZE, LATENT_DIM, NUM_PATCHES, NUM_PATCHES), jnp.float32)
    # spatial: 16 -> 16 -> 8 -> 4 -> 2  =>  flatten_dim = C * 2 * 2 = 16
    flatten_dim = LATENT_DIM * (NUM_PATCHES // 8) * (NUM_PATCHES // 8)
    params = init_params(k_p, LATENT_DIM, NUM_CLASSES, flatten_dim)

    # Hoisted precompute: slabs built once per parameter set, not per forward call.
    w_slab, r_slab, meta = precompute_operands(params)
    forward = jax.jit(functools.partial(cnn_block_forward, meta=meta))

    out = jax.block_until_ready(forward(x, w_slab, r_slab))
    assert out.shape == (BATCH_SIZE, NUM_CLASSES), out.shape

    ref = jax.block_until_ready(jax.jit(reference_forward)(x, params))
    assert jnp.allclose(out, ref, rtol=2e-3, atol=2e-3), float(jnp.max(jnp.abs(out - ref)))

    print("KERNEL_OK")
</pallas_src>

<mosaic_0001>
module attributes {stable_mosaic.version = 11 : i64} {
  func.func @_cnn_forward_kernel(%arg0: memref<32x64xf32, #tpu.memory_space<vmem>>, %arg1: memref<632x64xf32, #tpu.memory_space<vmem>>, %arg2: memref<11x64xf32, #tpu.memory_space<vmem>>, %arg3: memref<2x10xf32, #tpu.memory_space<vmem>>) attributes {dimension_semantics = [], scalar_prefetch = 0 : i64, scratch_operands = 0 : i64, tpu.core_type = #tpu.core_type<tc>} {
    %c0 = arith.constant 0 : index
    %c0_0 = arith.constant 0 : index
    %0 = vector.load %arg0[%c0, %c0_0] : memref<32x64xf32, #tpu.memory_space<vmem>>, vector<32x64xf32>
    %cst = arith.constant 0.000000e+00 : f32
    %1 = vector.broadcast %cst : f32 to vector<2x64xf32>
    %2 = vector.extract_strided_slice %0 {offsets = [0, 0], sizes = [30, 64], strides = [1, 1]} : vector<32x64xf32> to vector<30x64xf32>
    %3 = tpu.concatenate %1, %2 in 0 : vector<2x64xf32>, vector<30x64xf32> -> vector<32x64xf32>
    %4 = vector.extract_strided_slice %0 {offsets = [2, 0], sizes = [30, 64], strides = [1, 1]} : vector<32x64xf32> to vector<30x64xf32>
    %5 = tpu.concatenate %4, %1 in 0 : vector<30x64xf32>, vector<2x64xf32> -> vector<32x64xf32>
    %6 = tpu.concatenate %3, %0, %5 in 1 : vector<32x64xf32>, vector<32x64xf32>, vector<32x64xf32> -> vector<32x192xf32>
    %c0_1 = arith.constant 0 : index
    %c0_2 = arith.constant 0 : index
    %7 = vector.load %arg1[%c0_1, %c0_2] : memref<632x64xf32, #tpu.memory_space<vmem>>, vector<192x64xf32>
    %cst_3 = arith.constant dense<0.000000e+00> : vector<32x64xf32>
    %8 = tpu.matmul %6, %7, %cst_3 {dimension_numbers = #tpu.dot_dimension_numbers<[1], [0], [0], [1], [0, 0, 1, 1], [], []>} : vector<32x192xf32>, vector<192x64xf32>, vector<32x64xf32> -> vector<32x64xf32>
    %c0_4 = arith.constant 0 : index
    %c0_5 = arith.constant 0 : index
    %9 = vector.load %arg2[%c0_4, %c0_5] : memref<11x64xf32, #tpu.memory_space<vmem>>, vector<1x64xf32>
    %10 = vector.broadcast %9 : vector<1x64xf32> to vector<32x64xf32>
    %11 = arith.addf %8, %10 : vector<32x64xf32>
    %cst_6 = arith.constant 0.000000e+00 : f32
    %12 = vector.broadcast %cst_6 : f32 to vector<32x64xf32>
    %13 = arith.maximumf %11, %12 : vector<32x64xf32>
    %c1 = arith.constant 1 : index
    %c0_7 = arith.constant 0 : index
    %14 = vector.load %arg2[%c1, %c0_7] : memref<11x64xf32, #tpu.memory_space<vmem>>, vector<1x64xf32>
    %15 = vector.broadcast %14 : vector<1x64xf32> to vector<32x64xf32>
    %16 = arith.mulf %13, %15 : vector<32x64xf32>
    %c2 = arith.constant 2 : index
    %c0_8 = arith.constant 0 : index
    %17 = vector.load %arg2[%c2, %c0_8] : memref<11x64xf32, #tpu.memory_space<vmem>>, vector<1x64xf32>
    %18 = vector.broadcast %17 : vector<1x64xf32> to vector<32x64xf32>
    %19 = arith.addf %16, %18 : vector<32x64xf32>
    %c384 = arith.constant 384 : index
    %c0_9 = arith.constant 0 : index
    %20 = vector.load %arg1[%c384, %c0_9] : memref<632x64xf32, #tpu.memory_space<vmem>>, vector<48x32xf32>
    %cst_10 = arith.constant dense<0.000000e+00> : vector<48x64xf32>
    %21 = tpu.matmul %20, %19, %cst_10 {dimension_numbers = #tpu.dot_dimension_numbers<[1], [0], [0], [1], [0, 0, 1, 1], [], []>} : vector<48x32xf32>, vector<32x64xf32>, vector<48x64xf32> -> vector<48x64xf32>
    %22 = vector.extract_strided_slice %21 {offsets = [0, 0], sizes = [16, 64], strides = [1, 1]} : vector<48x64xf32> to vector<16x64xf32>
    %23 = vector.extract_strided_slice %21 {offsets = [16, 0], sizes = [16, 64], strides = [1, 1]} : vector<48x64xf32> to vector<16x64xf32>
    %24 = vector.extract_strided_slice %21 {offsets = [32, 0], sizes = [16, 64], strides = [1, 1]} : vector<48x64xf32> to vector<16x64xf32>
    %25 = tpu.concatenate %22, %23, %24 in 1 : vector<16x64xf32>, vector<16x64xf32>, vector<16x64xf32> -> vector<16x192xf32>
    %c192 = arith.constant 192 : index
    %c0_11 = arith.constant 0 : index
    %26 = vector.load %arg1[%c192, %c0_11] : memref<632x64xf32, #tpu.memory_space<vmem>>, vector<192x32xf32>
    %cst_12 = arith.constant dense<0.000000e+00> : vector<16x32xf32>
    %27 = tpu.matmul %25, %26, %cst_12 {dimension_numbers = #tpu.dot_dimension_numbers<[1], [0], [0], [1], [0, 0, 1, 1], [], []>} : vector<16x192xf32>, vector<192x32xf32>, vector<16x32xf32> -> vector<16x32xf32>
    %c3 = arith.constant 3 : index
    %c0_13 = arith.constant 0 : index
    %28 = vector.load %arg2[%c3, %c0_13] : memref<11x64xf32, #tpu.memory_space<vmem>>, vector<1x32xf32>
    %29 = vector.broadcast %28 : vector<1x32xf32> to vector<16x32xf32>
    %30 = arith.addf %27, %29 : vector<16x32xf32>
    %cst_14 = arith.constant 0.000000e+00 : f32
    %31 = vector.broadcast %cst_14 : f32 to vector<16x32xf32>
    %32 = arith.maximumf %30, %31 : vector<16x32xf32>
    %c4 = arith.constant 4 : index
    %c0_15 = arith.constant 0 : index
    %33 = vector.load %arg2[%c4, %c0_15] : memref<11x64xf32, #tpu.memory_space<vmem>>, vector<1x32xf32>
    %34 = vector.broadcast %33 : vector<1x32xf32> to vector<16x32xf32>
    %35 = arith.mulf %32, %34 : vector<16x32xf32>
    %c5 = arith.constant 5 : index
    %c0_16 = arith.constant 0 : index
    %36 = vector.load %arg2[%c5, %c0_16] : memref<11x64xf32, #tpu.memory_space<vmem>>, vector<1x32xf32>
    %37 = vector.broadcast %36 : vector<1x32xf32> to vector<16x32xf32>
    %38 = arith.addf %35, %37 : vector<16x32xf32>
    %c528 = arith.constant 528 : index
    %c0_17 = arith.constant 0 : index
    %39 = vector.load %arg1[%c528, %c0_17] : memref<632x64xf32, #tpu.memory_space<vmem>>, vector<24x16xf32>
    %cst_18 = arith.constant dense<0.000000e+00> : vector<24x32xf32>
    %40 = tpu.matmul %39, %38, %cst_18 {dimension_numbers = #tpu.dot_dimension_numbers<[1], [0], [0], [1], [0, 0, 1, 1], [], []>} : vector<24x16xf32>, vector<16x32xf32>, vector<24x32xf32> -> vector<24x32xf32>
    %41 = vector.extract_strided_slice %40 {offsets = [0, 0], sizes = [8, 32], strides = [1, 1]} : vector<24x32xf32> to vector<8x32xf32>
    %42 = vector.extract_strided_slice %40 {offsets = [8, 0], sizes = [8, 32], strides = [1, 1]} : vector<24x32xf32> to vector<8x32xf32>
    %43 = vector.extract_strided_slice %40 {offsets = [16, 0], sizes = [8, 32], strides = [1, 1]} : vector<24x32xf32> to vector<8x32xf32>
    %44 = tpu.concatenate %41, %42, %43 in 1 : vector<8x32xf32>, vector<8x32xf32>, vector<8x32xf32> -> vector<8x96xf32>
    %c432 = arith.constant 432 : index
    %c0_19 = arith.constant 0 : index
    %45 = vector.load %arg1[%c432, %c0_19] : memref<632x64xf32, #tpu.memory_space<vmem>>, vector<96x16xf32>
    %cst_20 = arith.constant dense<0.000000e+00> : vector<8x16xf32>
    %46 = tpu.matmul %44, %45, %cst_20 {dimension_numbers = #tpu.dot_dimension_numbers<[1], [0], [0], [1], [0, 0, 1, 1], [], []>} : vector<8x96xf32>, vector<96x16xf32>, vector<8x16xf32> -> vector<8x16xf32>
    %c6 = arith.constant 6 : index
    %c0_21 = arith.constant 0 : index
    %47 = vector.load %arg2[%c6, %c0_21] : memref<11x64xf32, #tpu.memory_space<vmem>>, vector<1x16xf32>
    %48 = vector.broadcast %47 : vector<1x16xf32> to vector<8x16xf32>
    %49 = arith.addf %46, %48 : vector<8x16xf32>
    %cst_22 = arith.constant 0.000000e+00 : f32
    %50 = vector.broadcast %cst_22 : f32 to vector<8x16xf32>
    %51 = arith.maximumf %49, %50 : vector<8x16xf32>
    %c7 = arith.constant 7 : index
    %c0_23 = arith.constant 0 : index
    %52 = vector.load %arg2[%c7, %c0_23] : memref<11x64xf32, #tpu.memory_space<vmem>>, vector<1x16xf32>
    %53 = vector.broadcast %52 : vector<1x16xf32> to vector<8x16xf32>
    %54 = arith.mulf %51, %53 : vector<8x16xf32>
    %c8 = arith.constant 8 : index
    %c0_24 = arith.constant 0 : index
    %55 = vector.load %arg2[%c8, %c0_24] : memref<11x64xf32, #tpu.memory_space<vmem>>, vector<1x16xf32>
    %56 = vector.broadcast %55 : vector<1x16xf32> to vector<8x16xf32>
    %57 = arith.addf %54, %56 : vector<8x16xf32>
    %c600 = arith.constant 600 : index
    %c0_25 = arith.constant 0 : index
    %58 = vector.load %arg1[%c600, %c0_25] : memref<632x64xf32, #tpu.memory_space<vmem>>, vector<12x8xf32>
    %cst_26 = arith.constant dense<0.000000e+00> : vector<12x16xf32>
    %59 = tpu.matmul %58, %57, %cst_26 {dimension_numbers = #tpu.dot_dimension_numbers<[1], [0], [0], [1], [0, 0, 1, 1], [], []>} : vector<12x8xf32>, vector<8x16xf32>, vector<12x16xf32> -> vector<12x16xf32>
    %60 = vector.extract_strided_slice %59 {offsets = [0, 0], sizes = [4, 16], strides = [1, 1]} : vector<12x16xf32> to vector<4x16xf32>
    %61 = vector.extract_strided_slice %59 {offsets = [4, 0], sizes = [4, 16], strides = [1, 1]} : vector<12x16xf32> to vector<4x16xf32>
    %62 = vector.extract_strided_slice %59 {offsets = [8, 0], sizes = [4, 16], strides = [1, 1]} : vector<12x16xf32> to vector<4x16xf32>
    %63 = tpu.concatenate %60, %61, %62 in 1 : vector<4x16xf32>, vector<4x16xf32>, vector<4x16xf32> -> vector<4x48xf32>
    %c552 = arith.constant 552 : index
    %c0_27 = arith.constant 0 : index
    %64 = vector.load %arg1[%c552, %c0_27] : memref<632x64xf32, #tpu.memory_space<vmem>>, vector<48x8xf32>
    %cst_28 = arith.constant dense<0.000000e+00> : vector<4x8xf32>
    %65 = tpu.matmul %63, %64, %cst_28 {dimension_numbers = #tpu.dot_dimension_numbers<[1], [0], [0], [1], [0, 0, 1, 1], [], []>} : vector<4x48xf32>, vector<48x8xf32>, vector<4x8xf32> -> vector<4x8xf32>
    %c9 = arith.constant 9 : index
    %c0_29 = arith.constant 0 : index
    %66 = vector.load %arg2[%c9, %c0_29] : memref<11x64xf32, #tpu.memory_space<vmem>>, vector<1x8xf32>
    %67 = vector.broadcast %66 : vector<1x8xf32> to vector<4x8xf32>
    %68 = arith.addf %65, %67 : vector<4x8xf32>
    %cst_30 = arith.constant 0.000000e+00 : f32
    %69 = vector.broadcast %cst_30 : f32 to vector<4x8xf32>
    %70 = arith.maximumf %68, %69 : vector<4x8xf32>
    %71 = vector.extract_strided_slice %70 {offsets = [0, 0], sizes = [2, 8], strides = [1, 1]} : vector<4x8xf32> to vector<2x8xf32>
    %72 = vector.extract_strided_slice %70 {offsets = [2, 0], sizes = [2, 8], strides = [1, 1]} : vector<4x8xf32> to vector<2x8xf32>
    %73 = tpu.concatenate %71, %72 in 1 : vector<2x8xf32>, vector<2x8xf32> -> vector<2x16xf32>
    %c616 = arith.constant 616 : index
    %c0_31 = arith.constant 0 : index
    %74 = vector.load %arg1[%c616, %c0_31] : memref<632x64xf32, #tpu.memory_space<vmem>>, vector<16x10xf32>
    %cst_32 = arith.constant dense<0.000000e+00> : vector<2x10xf32>
    %75 = tpu.matmul %73, %74, %cst_32 {dimension_numbers = #tpu.dot_dimension_numbers<[1], [0], [0], [1], [0, 0, 1, 1], [], []>} : vector<2x16xf32>, vector<16x10xf32>, vector<2x10xf32> -> vector<2x10xf32>
    %c10 = arith.constant 10 : index
    %c0_33 = arith.constant 0 : index
    %76 = vector.load %arg2[%c10, %c0_33] : memref<11x64xf32, #tpu.memory_space<vmem>>, vector<1x10xf32>
    %77 = vector.broadcast %76 : vector<1x10xf32> to vector<2x10xf32>
    %78 = arith.addf %75, %77 : vector<2x10xf32>
    %c0_34 = arith.constant 0 : index
    %c0_35 = arith.constant 0 : index
    %79 = vector.load %arg3[%c0_34, %c0_35] : memref<2x10xf32, #tpu.memory_space<vmem>>, vector<2x10xf32>
    tpu.vector_store %arg3[%c0_34, %c0_35], %78 {strides = array<i32>} : memref<2x10xf32, #tpu.memory_space<vmem>>, vector<2x10xf32>,
    return
  }
}

</mosaic_0001>

<llo_original>
// kernel: cnn_block_forward.1
$region0: #{cnn_block_forward.1}
  #allocation0 [shape = 'u32[]', space=smem, size = 0x4, offset = 0x4, fixed_abs, tag = 'smem constant byte address 0x4 - core index']
  #allocation1 [shape = 'u32[144,128]{1,0:T(1,128)}', space=vmem, size = 0x12000, scoped, tag = 'internal scratch']
  %s0 = inlined_call_operand.vmem [shape: f32[32,64], index: 0, kind: input, shape index: {}]
  %s1 = inlined_call_operand.vmem [shape: f32[632,64], index: 1, kind: input, shape index: {}]
  %s2 = inlined_call_operand.vmem [shape: f32[11,64], index: 2, kind: input, shape index: {}]
  %s3 = inlined_call_operand.hbm [shape: f32[2,10], index: 3, kind: output, shape index: {}]
  %s4 = sld [smem:[#allocation0]]
  $region22: #{cnn_block_forward.1} parent=0
    _
  %s6 = ssub.s32 1, %s4
  %s7 = scalar_select 0, %s6, %s4
  $region1: #{cnn_block_forward.1} parent=0
    #allocation2 [shape = 'u8[1024]{0}', space=vmem, size = 0x400, scoped, tag = 'output window, operand 0, single buffered']
    #allocation3 [shape = 's32[1]{0}', space=sflag, size = 0x4, scoped, tag = 'scoped memory for cnn_block_forward.1']
    %8 = vsyncpa [#allocation3], 0
    // Predicated region
    $region2: #{cnn_block_forward.1} parent=1 // pred_check
      _
    $region3: #{cnn_block_forward.1} parent=1 // pred_check_branch
      %10 = sbr.rel (0) target = $region5
    $region4: #{cnn_block_forward.1} parent=1 // pred_region
      _
    $region5: #{cnn_block_forward.1} parent=1 // pred_fallthru
      _
    // Predicated region
    $region6: #{cnn_block_forward.1} parent=1 // pred_check
      _
    $region7: #{cnn_block_forward.1} parent=1 // pred_check_branch
      %12 = sbr.rel (0) target = $region9
    $region8: #{cnn_block_forward.1} parent=1 // pred_region
      _
    $region9: #{cnn_block_forward.1} parent=1 // pred_fallthru
      _
    // Predicated region
    $region10: #{cnn_block_forward.1} parent=1 // pred_check
      _
    $region11: #{cnn_block_forward.1} parent=1 // pred_check_branch
      %14 = sbr.rel (0) target = $region13
    $region12: #{cnn_block_forward.1} parent=1 // pred_region
      _
    $region13: #{cnn_block_forward.1} parent=1 // pred_fallthru
      _
    %v15 = vld [vmem:[%s0] sm:$0xff]
    %v16 = vld [vmem:[%s0 + $0x8] sm:$0xff]
    %v17 = vld [vmem:[%s0 + $0x10] sm:$0xff]
    %v18 = vld [vmem:[%s0 + $0x18] sm:$0xff]
    %vm23 = vcmask 1041408
    %v24 = vrot.slane %v15, 6
    %v25 = vrot.slane %v16, 6
    %v26 = vsel %vm23, %v24, %v25
    %v27 = vrot.slane %v17, 6
    %v28 = vsel %vm23, %v25, %v27
    %v29 = vrot.slane %v18, 6
    %v30 = vsel %vm23, %v27, %v29
    %v35 = vsel %vm23, 0.0, %v24
    %vm36 = vcmask 1045504
    %v37 = vrot.slane %v15, 2
    %v38 = vrot.slane %v16, 2
    %v39 = vsel %vm36, %v37, %v38
    %v40 = vrot.slane %v17, 2
    %v41 = vsel %vm36, %v38, %v40
    %v42 = vrot.slane %v18, 2
    %v43 = vsel %vm36, %v40, %v42
    %v45 = vsel %vm36, %v42, 0.0
    %46 = vrot.lane.b32.xlu0 %v15, 64
    %v47 = vpop.permute.xlu0 %46
    %48 = vrot.lane.b32.xlu0 %v16, 64
    %v49 = vpop.permute.xlu0 %48
    %50 = vrot.lane.b32.xlu0 %v17, 64
    %v51 = vpop.permute.xlu0 %50
    %52 = vrot.lane.b32.xlu0 %v18, 64
    %v53 = vpop.permute.xlu0 %52
    %vm58 = vcmask 523264
    %v59 = vsel %vm58, %v35, %v47
    %v60 = vsel %vm58, %v26, %v49
    %v61 = vsel %vm58, %v28, %v51
    %v62 = vsel %vm58, %v30, %v53
    %v63 = vld [vmem:[%s1] sm:$0xff]
    %v64 = vld [vmem:[%s1 + $0x8] sm:$0xff]
    %v65 = vld [vmem:[%s1 + $0x10] sm:$0xff]
    %v66 = vld [vmem:[%s1 + $0x18] sm:$0xff]
    %v67 = vld [vmem:[%s1 + $0x20] sm:$0xff]
    %v68 = vld [vmem:[%s1 + $0x28] sm:$0xff]
    %v69 = vld [vmem:[%s1 + $0x30] sm:$0xff]
    %v70 = vld [vmem:[%s1 + $0x38] sm:$0xff]
    %v71 = vld [vmem:[%s1 + $0x40] sm:$0xff]
    %v72 = vld [vmem:[%s1 + $0x48] sm:$0xff]
    %v73 = vld [vmem:[%s1 + $0x50] sm:$0xff]
    %v74 = vld [vmem:[%s1 + $0x58] sm:$0xff]
    %v75 = vld [vmem:[%s1 + $0x60] sm:$0xff]
    %v76 = vld [vmem:[%s1 + $0x68] sm:$0xff]
    %v77 = vld [vmem:[%s1 + $0x70] sm:$0xff]
    %v78 = vld [vmem:[%s1 + $0x78] sm:$0xff]
    %v79 = vld [vmem:[%s1 + $0x80] sm:$0xff]
    %v80 = vld [vmem:[%s1 + $0x88] sm:$0xff]
    %v81 = vld [vmem:[%s1 + $0x90] sm:$0xff]
    %v82 = vld [vmem:[%s1 + $0x98] sm:$0xff]
    %v83 = vld [vmem:[%s1 + $0xa0] sm:$0xff]
    %v84 = vld [vmem:[%s1 + $0xa8] sm:$0xff]
    %v85 = vld [vmem:[%s1 + $0xb0] sm:$0xff]
    %v86 = vld [vmem:[%s1 + $0xb8] sm:$0xff]
    %v87 = vld [vmem:[%s2] sm:$0x1]
    %v88 = vlaneseq
    %v89 = vshrl.u32 %v88, 7
    %v90 = vsub.s32 0, %v89
    %v91 = vrot.slane %v87, %v90
    %v92 = vsel %vm58, %v39, 0
    %v94 = vsel %vm58, %v41, 0
    %v96 = vsel %vm58, %v43, 0
    %v99 = vsel %vm58, %v45, 0
    %101 = vmatprep.subr.mxu0 0.0
    %102 = vmatpush1.msra.mxu0 %v63
    %103 = vmatprep.subr.mxu0 0.0
    %104 = vmatpush1.msra.mxu0 %v64
    %105 = vmatprep.subr.mxu0 0.0
    %106 = vmatpush1.msra.mxu0 %v65
    %107 = vmatprep.subr.mxu0 0.0
    %108 = vmatpush1.msra.mxu0 %v66
    %109 = vmatprep.subr.mxu0 0.0
    %110 = vmatpush1.msra.mxu0 %v67
    %111 = vmatprep.subr.mxu0 0.0
    %112 = vmatpush1.msra.mxu0 %v68
    %113 = vmatprep.subr.mxu0 0.0
    %114 = vmatpush1.msra.mxu0 %v69
    %115 = vmatprep.subr.mxu0 0.0
    %116 = vmatpush1.msra.mxu0 %v70
    %117 = vmatprep.subr.mxu0 0.0
    %118 = vmatpush1.msra.mxu0 %v71
    %119 = vmatprep.subr.mxu0 0.0
    %120 = vmatpush1.msra.mxu0 %v72
    %121 = vmatprep.subr.mxu0 0.0
    %122 = vmatpush1.msra.mxu0 %v73
    %123 = vmatprep.subr.mxu0 0.0
    %124 = vmatpush1.msra.mxu0 %v74
    %125 = vmatprep.subr.mxu0 0.0
    %126 = vmatpush1.msra.mxu0 %v75
    %127 = vmatprep.subr.mxu0 0.0
    %128 = vmatpush1.msra.mxu0 %v76
    %129 = vmatprep.subr.mxu0 0.0
    %130 = vmatpush1.msra.mxu0 %v77
    %131 = vmatprep.subr.mxu0 0.0
    %132 = vmatpush1.msra.mxu0 %v78
    %133 = vmatprep.subr.mxu0 0.0
    %134 = vmatpush1.msra.mxu0 %v79
    %135 = vmatprep.subr.mxu0 0.0
    %136 = vmatpush1.msra.mxu0 %v80
    %137 = vmatprep.subr.mxu0 0.0
    %138 = vmatpush1.msra.mxu0 %v81
    %139 = vmatprep.subr.mxu0 0.0
    %140 = vmatpush1.msra.mxu0 %v82
    %141 = vmatprep.subr.mxu0 0.0
    %142 = vmatpush1.msra.mxu0 %v83
    %143 = vmatprep.subr.mxu0 0.0
    %144 = vmatpush1.msra.mxu0 %v84
    %145 = vmatprep.subr.mxu0 0.0
    %146 = vmatpush1.msra.mxu0 %v85
    %147 = vmatprep.subr.mxu0 0.0
    %148 = vmatpush1.msra.mxu0 %v86
    %149 = vmatprep.subr.mxu0 0.0
    %150 = vmatpush1.msra.mxu0 0.0
    %151 = vmatprep.subr.mxu0 0.0
    %152 = vmatpush1.msra.mxu0 0.0
    %153 = vmatprep.subr.mxu0 0.0
    %154 = vmatpush1.msra.mxu0 0.0
    %155 = vmatprep.subr.mxu0 0.0
    %156 = vmatpush1.msra.mxu0 0.0
    %157 = vmatprep.subr.mxu0 0.0
    %158 = vmatpush1.msra.mxu0 0.0
    %159 = vmatprep.subr.mxu0 0.0
    %160 = vmatpush1.msra.mxu0 0.0
    %161 = vmatprep.subr.mxu0 0.0
    %162 = vmatpush1.msra.mxu0 0.0
    %163 = vmatprep.subr.mxu0 0.0
    %164 = vmatpush1.msra.mxu0 0.0
    %165 = vmatprep.mubr.f32.mxu0 %v92
    %166 = vmatmul.mubr.f32.gmra.mrb[0].mxu0 %v59
    %v167 = vpop.f32.mrb[0].mxu0
    %v168 = vadd.f32 %v91, %v167
    %v169 = vpop.f32.mrb[0].mxu0
    %170 = vmatprep.mubr.f32.mxu0 %v94
    %171 = vmatmul.mubr.f32.gmra.mrb[0].mxu0 %v60
    %v172 = vpop.f32.mrb[0].mxu0
    %v173 = vadd.f32 %v91, %v172
    %v174 = vpop.f32.mrb[0].mxu0
    %175 = vmatprep.mubr.f32.mxu0 %v96
    %176 = vmatmul.mubr.f32.gmra.mrb[0].mxu0 %v61
    %v177 = vpop.f32.mrb[0].mxu0
    %v178 = vadd.f32 %v91, %v177
    %v179 = vpop.f32.mrb[0].mxu0
    %180 = vmatprep.mubr.f32.mxu0 %v99
    %181 = vmatmul.mubr.f32.gmra.mrb[0].mxu0 %v62
    %v182 = vpop.f32.mrb[0].mxu0
    %v183 = vadd.f32 %v91, %v182
    %v184 = vpop.f32.mrb[0].mxu0
    %185 = vdwg.mxu0
    %v186 = vmax.f32 %v168, 0.0
    %v187 = vmax.f32 %v173, 0.0
    %v188 = vmax.f32 %v178, 0.0
    %v189 = vmax.f32 %v183, 0.0
    %v190 = vld [vmem:[%s2 + $0x1] sm:$0x1]
    %v191 = vlaneseq
    %v192 = vshrl.u32 %v191, 7
    %v193 = vsub.s32 0, %v192
    %v194 = vrot.slane %v190, %v193
    %v195 = vmul.f32 %v186, %v194
    %v196 = vmul.f32 %v187, %v194
    %v197 = vmul.f32 %v188, %v194
    %v198 = vmul.f32 %v189, %v194
    %v199 = vld [vmem:[%s2 + $0x2] sm:$0x1]
    %v200 = vlaneseq
    %v201 = vshrl.u32 %v200, 7
    %v202 = vsub.s32 0, %v201
    %v203 = vrot.slane %v199, %v202
    %v204 = vadd.f32 %v195, %v203
    %v205 = vadd.f32 %v196, %v203
    %v206 = vadd.f32 %v197, %v203
    %v207 = vadd.f32 %v198, %v203
    %v208 = vld [vmem:[%s1 + $0x180] sm:$0xff]
    %v209 = vld [vmem:[%s1 + $0x188] sm:$0xff]
    %v210 = vld [vmem:[%s1 + $0x190] sm:$0xff]
    %v211 = vld [vmem:[%s1 + $0x198] sm:$0xff]
    %v212 = vld [vmem:[%s1 + $0x1a0] sm:$0xff]
    %v213 = vld [vmem:[%s1 + $0x1a8] sm:$0xff]
    %vm214 = vcmask 261120
    %v216 = vsel %vm214, %v208, 0
    %v219 = vsel %vm214, %v209, 0
    %v222 = vsel %vm214, %v210, 0
    %v225 = vsel %vm214, %v211, 0
    %v228 = vsel %vm214, %v212, 0
    %v231 = vsel %vm214, %v213, 0
    %233 = vmatprep.subr.mxu0 0.0
    %234 = vmatpush1.msra.mxu0 %v204
    %235 = vmatprep.subr.mxu0 0.0
    %236 = vmatpush1.msra.mxu0 %v205
    %237 = vmatprep.subr.mxu0 0.0
    %238 = vmatpush1.msra.mxu0 %v206
    %239 = vmatprep.subr.mxu0 0.0
    %240 = vmatpush1.msra.mxu0 %v207
    %241 = vmatprep.subr.mxu0 0.0
    %242 = vmatpush1.msra.mxu0 0.0
    %243 = vmatprep.subr.mxu0 0.0
    %244 = vmatpush1.msra.mxu0 0.0
    %245 = vmatprep.subr.mxu0 0.0
    %246 = vmatpush1.msra.mxu0 0.0
    %247 = vmatprep.subr.mxu0 0.0
    %248 = vmatpush1.msra.mxu0 0.0
    %249 = vmatprep.subr.mxu0 0.0
    %250 = vmatpush1.msra.mxu0 0.0
    %251 = vmatprep.subr.mxu0 0.0
    %252 = vmatpush1.msra.mxu0 0.0
    %253 = vmatprep.subr.mxu0 0.0
    %254 = vmatpush1.msra.mxu0 0.0
    %255 = vmatprep.subr.mxu0 0.0
    %256 = vmatpush1.msra.mxu0 0.0
    %257 = vmatprep.subr.mxu0 0.0
    %258 = vmatpush1.msra.mxu0 0.0
    %259 = vmatprep.subr.mxu0 0.0
    %260 = vmatpush1.msra.mxu0 0.0
    %261 = vmatprep.subr.mxu0 0.0
    %262 = vmatpush1.msra.mxu0 0.0
    %263 = vmatprep.subr.mxu0 0.0
    %264 = vmatpush1.msra.mxu0 0.0
    %265 = vmatprep.subr.mxu0 0.0
    %266 = vmatpush1.msra.mxu0 0.0
    %267 = vmatprep.subr.mxu0 0.0
    %268 = vmatpush1.msra.mxu0 0.0
    %269 = vmatprep.subr.mxu0 0.0
    %270 = vmatpush1.msra.mxu0 0.0
    %271 = vmatprep.subr.mxu0 0.0
    %272 = vmatpush1.msra.mxu0 0.0
    %273 = vmatprep.subr.mxu0 0.0
    %274 = vmatpush1.msra.mxu0 0.0
    %275 = vmatprep.subr.mxu0 0.0
    %276 = vmatpush1.msra.mxu0 0.0
    %277 = vmatprep.subr.mxu0 0.0
    %278 = vmatpush1.msra.mxu0 0.0
    %279 = vmatprep.subr.mxu0 0.0
    %280 = vmatpush1.msra.mxu0 0.0
    %281 = vmatprep.subr.mxu0 0.0
    %282 = vmatpush1.msra.mxu0 0.0
    %283 = vmatprep.subr.mxu0 0.0
    %284 = vmatpush1.msra.mxu0 0.0
    %285 = vmatprep.subr.mxu0 0.0
    %286 = vmatpush1.msra.mxu0 0.0
    %287 = vmatprep.subr.mxu0 0.0
    %288 = vmatpush1.msra.mxu0 0.0
    %289 = vmatprep.subr.mxu0 0.0
    %290 = vmatpush1.msra.mxu0 0.0
    %291 = vmatprep.subr.mxu0 0.0
    %292 = vmatpush1.msra.mxu0 0.0
    %293 = vmatprep.subr.mxu0 0.0
    %294 = vmatpush1.msra.mxu0 0.0
    %295 = vmatprep.subr.mxu0 0.0
    %296 = vmatpush1.msra.mxu0 0.0
    %297 = vmatprep.mubr.f32.mxu0 0.0
    %298 = vmatmul.mubr.f32.gmra.mrb[0].mxu0 %v216
    %v299 = vpop.f32.mrb[0].mxu0
    %v300 = vadd.f32 0.0, %v299
    %v301 = vpop.f32.mrb[0].mxu0
    %302 = vmatprep.mubr.f32.mxu0 0.0
    %303 = vmatmul.mubr.f32.gmra.mrb[0].mxu0 %v219
    %v304 = vpop.f32.mrb[0].mxu0
    %v305 = vadd.f32 0.0, %v304
    %v306 = vpop.f32.mrb[0].mxu0
    %307 = vmatprep.mubr.f32.mxu0 0.0
    %308 = vmatmul.mubr.f32.gmra.mrb[0].mxu0 %v222
    %v309 = vpop.f32.mrb[0].mxu0
    %v310 = vadd.f32 0.0, %v309
    %v311 = vpop.f32.mrb[0].mxu0
    %312 = vmatprep.mubr.f32.mxu0 0.0
    %313 = vmatmul.mubr.f32.gmra.mrb[0].mxu0 %v225
    %v314 = vpop.f32.mrb[0].mxu0
    %v315 = vadd.f32 0.0, %v314
    %v316 = vpop.f32.mrb[0].mxu0
    %317 = vmatprep.mubr.f32.mxu0 0.0
    %318 = vmatmul.mubr.f32.gmra.mrb[0].mxu0 %v228
    %v319 = vpop.f32.mrb[0].mxu0
    %v320 = vadd.f32 0.0, %v319
    %v321 = vpop.f32.mrb[0].mxu0
    %322 = vmatprep.mubr.f32.mxu0 0.0
    %323 = vmatmul.mubr.f32.gmra.mrb[0].mxu0 %v231
    %v324 = vpop.f32.mrb[0].mxu0
    %v325 = vadd.f32 0.0, %v324
    %v326 = vpop.f32.mrb[0].mxu0
    %327 = vdwg.mxu0
    %330 = vrot.lane.b32.xlu0 %v310, 64
    %v331 = vpop.permute.xlu0 %330
    %332 = vrot.lane.b32.xlu0 %v315, 64
    %v333 = vpop.permute.xlu0 %332
    %v336 = vsel %vm58, %v300, %v331
    %v337 = vsel %vm58, %v305, %v333
    %v338 = vld [vmem:[%s1 + $0xc0] sm:$0xff]
    %v339 = vld [vmem:[%s1 + $0xc8] sm:$0xff]
    %v340 = vld [vmem:[%s1 + $0xd0] sm:$0xff]
    %v341 = vld [vmem:[%s1 + $0xd8] sm:$0xff]
    %v342 = vld [vmem:[%s1 + $0xe0] sm:$0xff]
    %v343 = vld [vmem:[%s1 + $0xe8] sm:$0xff]
    %v344 = vld [vmem:[%s1 + $0xf0] sm:$0xff]
    %v345 = vld [vmem:[%s1 + $0xf8] sm:$0xff]
    %v346 = vld [vmem:[%s1 + $0x100] sm:$0xff]
    %v347 = vld [vmem:[%s1 + $0x108] sm:$0xff]
    %v348 = vld [vmem:[%s1 + $0x110] sm:$0xff]
    %v349 = vld [vmem:[%s1 + $0x118] sm:$0xff]
    %v350 = vld [vmem:[%s1 + $0x120] sm:$0xff]
    %v351 = vld [vmem:[%s1 + $0x128] sm:$0xff]
    %v352 = vld [vmem:[%s1 + $0x130] sm:$0xff]
    %v353 = vld [vmem:[%s1 + $0x138] sm:$0xff]
    %v354 = vld [vmem:[%s1 + $0x140] sm:$0xff]
    %v355 = vld [vmem:[%s1 + $0x148] sm:$0xff]
    %v356 = vld [vmem:[%s1 + $0x150] sm:$0xff]
    %v357 = vld [vmem:[%s1 + $0x158] sm:$0xff]
    %v358 = vld [vmem:[%s1 + $0x160] sm:$0xff]
    %v359 = vld [vmem:[%s1 + $0x168] sm:$0xff]
    %v360 = vld [vmem:[%s1 + $0x170] sm:$0xff]
    %v361 = vld [vmem:[%s1 + $0x178] sm:$0xff]
    %v362 = vld [vmem:[%s2 + $0x3] sm:$0x1]
    %v363 = vlaneseq
    %v364 = vshrl.u32 %v363, 7
    %v365 = vsub.s32 0, %v364
    %v366 = vrot.slane %v362, %v365
    %v368 = vsel %vm58, %v320, 0
    %v371 = vsel %vm58, %v325, 0
    %373 = vmatprep.subr.mxu0 0.0
    %374 = vmatpush1.msra.mxu0 %v338
    %375 = vmatprep.subr.mxu0 0.0
    %376 = vmatpush1.msra.mxu0 %v339
    %377 = vmatprep.subr.mxu0 0.0
    %378 = vmatpush1.msra.mxu0 %v340
    %379 = vmatprep.subr.mxu0 0.0
    %380 = vmatpush1.msra.mxu0 %v341
    %381 = vmatprep.subr.mxu0 0.0
    %382 = vmatpush1.msra.mxu0 %v342
    %383 = vmatprep.subr.mxu0 0.0
    %384 = vmatpush1.msra.mxu0 %v343
    %385 = vmatprep.subr.mxu0 0.0
    %386 = vmatpush1.msra.mxu0 %v344
    %387 = vmatprep.subr.mxu0 0.0
    %388 = vmatpush1.msra.mxu0 %v345
    %389 = vmatprep.subr.mxu0 0.0
    %390 = vmatpush1.msra.mxu0 %v346
    %391 = vmatprep.subr.mxu0 0.0
    %392 = vmatpush1.msra.mxu0 %v347
    %393 = vmatprep.subr.mxu0 0.0
    %394 = vmatpush1.msra.mxu0 %v348
    %395 = vmatprep.subr.mxu0 0.0
    %396 = vmatpush1.msra.mxu0 %v349
    %397 = vmatprep.subr.mxu0 0.0
    %398 = vmatpush1.msra.mxu0 %v350
    %399 = vmatprep.subr.mxu0 0.0
    %400 = vmatpush1.msra.mxu0 %v351
    %401 = vmatprep.subr.mxu0 0.0
    %402 = vmatpush1.msra.mxu0 %v352
    %403 = vmatprep.subr.mxu0 0.0
    %404 = vmatpush1.msra.mxu0 %v353
    %405 = vmatprep.subr.mxu0 0.0
    %406 = vmatpush1.msra.mxu0 %v354
    %407 = vmatprep.subr.mxu0 0.0
    %408 = vmatpush1.msra.mxu0 %v355
    %409 = vmatprep.subr.mxu0 0.0
    %410 = vmatpush1.msra.mxu0 %v356
    %411 = vmatprep.subr.mxu0 0.0
    %412 = vmatpush1.msra.mxu0 %v357
    %413 = vmatprep.subr.mxu0 0.0
    %414 = vmatpush1.msra.mxu0 %v358
    %415 = vmatprep.subr.mxu0 0.0
    %416 = vmatpush1.msra.mxu0 %v359
    %417 = vmatprep.subr.mxu0 0.0
    %418 = vmatpush1.msra.mxu0 %v360
    %419 = vmatprep.subr.mxu0 0.0
    %420 = vmatpush1.msra.mxu0 %v361
    %421 = vmatprep.subr.mxu0 0.0
    %422 = vmatpush1.msra.mxu0 0.0
    %423 = vmatprep.subr.mxu0 0.0
    %424 = vmatpush1.msra.mxu0 0.0
    %425 = vmatprep.subr.mxu0 0.0
    %426 = vmatpush1.msra.mxu0 0.0
    %427 = vmatprep.subr.mxu0 0.0
    %428 = vmatpush1.msra.mxu0 0.0
    %429 = vmatprep.subr.mxu0 0.0
    %430 = vmatpush1.msra.mxu0 0.0
    %431 = vmatprep.subr.mxu0 0.0
    %432 = vmatpush1.msra.mxu0 0.0
    %433 = vmatprep.subr.mxu0 0.0
    %434 = vmatpush1.msra.mxu0 0.0
    %435 = vmatprep.subr.mxu0 0.0
    %436 = vmatpush1.msra.mxu0 0.0
    %437 = vmatprep.mubr.f32.mxu0 %v368
    %438 = vmatmul.mubr.f32.gmra.mrb[0].mxu0 %v336
    %v439 = vpop.f32.mrb[0].mxu0
    %v440 = vadd.f32 %v366, %v439
    %v441 = vpop.f32.mrb[0].mxu0
    %442 = vmatprep.mubr.f32.mxu0 %v371
    %443 = vmatmul.mubr.f32.gmra.mrb[0].mxu0 %v337
    %v444 = vpop.f32.mrb[0].mxu0
    %v445 = vadd.f32 %v366, %v444
    %v446 = vpop.f32.mrb[0].mxu0
    %447 = vdwg.mxu0
    %v448 = vmax.f32 %v440, 0.0
    %v449 = vmax.f32 %v445, 0.0
    %v450 = vld [vmem:[%s2 + $0x4] sm:$0x1]
    %v451 = vlaneseq
    %v452 = vshrl.u32 %v451, 7
    %v453 = vsub.s32 0, %v452
    %v454 = vrot.slane %v450, %v453
    %v455 = vmul.f32 %v448, %v454
    %v456 = vmul.f32 %v449, %v454
    %v457 = vld [vmem:[%s2 + $0x5] sm:$0x1]
    %v458 = vlaneseq
    %v459 = vshrl.u32 %v458, 7
    %v460 = vsub.s32 0, %v459
    %v461 = vrot.slane %v457, %v460
    %v462 = vadd.f32 %v455, %v461
    %v463 = vadd.f32 %v456, %v461
    %v464 = vld [vmem:[%s1 + $0x210] sm:$0xff]
    %v465 = vld [vmem:[%s1 + $0x218] sm:$0xff]
    %v466 = vld [vmem:[%s1 + $0x220] sm:$0xff]
    %vm467 = vcmask 130048
    %v469 = vsel %vm467, %v464, 0
    %v472 = vsel %vm467, %v465, 0
    %v475 = vsel %vm467, %v466, 0
    %477 = vmatprep.subr.mxu0 0.0
    %478 = vmatpush1.msra.mxu0 %v462
    %479 = vmatprep.subr.mxu0 0.0
    %480 = vmatpush1.msra.mxu0 %v463
    %481 = vmatprep.subr.mxu0 0.0
    %482 = vmatpush1.msra.mxu0 0.0
    %483 = vmatprep.subr.mxu0 0.0
    %484 = vmatpush1.msra.mxu0 0.0
    %485 = vmatprep.subr.mxu0 0.0
    %486 = vmatpush1.msra.mxu0 0.0
    %487 = vmatprep.subr.mxu0 0.0
    %488 = vmatpush1.msra.mxu0 0.0
    %489 = vmatprep.subr.mxu0 0.0
    %490 = vmatpush1.msra.mxu0 0.0
    %491 = vmatprep.subr.mxu0 0.0
    %492 = vmatpush1.msra.mxu0 0.0
    %493 = vmatprep.subr.mxu0 0.0
    %494 = vmatpush1.msra.mxu0 0.0
    %495 = vmatprep.subr.mxu0 0.0
    %496 = vmatpush1.msra.mxu0 0.0
    %497 = vmatprep.subr.mxu0 0.0
    %498 = vmatpush1.msra.mxu0 0.0
    %499 = vmatprep.subr.mxu0 0.0
    %500 = vmatpush1.msra.mxu0 0.0
    %501 = vmatprep.subr.mxu0 0.0
    %502 = vmatpush1.msra.mxu0 0.0
    %503 = vmatprep.subr.mxu0 0.0
    %504 = vmatpush1.msra.mxu0 0.0
    %505 = vmatprep.subr.mxu0 0.0
    %506 = vmatpush1.msra.mxu0 0.0
    %507 = vmatprep.subr.mxu0 0.0
    %508 = vmatpush1.msra.mxu0 0.0
    %509 = vmatprep.subr.mxu0 0.0
    %510 = vmatpush1.msra.mxu0 0.0
    %511 = vmatprep.subr.mxu0 0.0
    %512 = vmatpush1.msra.mxu0 0.0
    %513 = vmatprep.subr.mxu0 0.0
    %514 = vmatpush1.msra.mxu0 0.0
    %515 = vmatprep.subr.mxu0 0.0
    %516 = vmatpush1.msra.mxu0 0.0
    %517 = vmatprep.subr.mxu0 0.0
    %518 = vmatpush1.msra.mxu0 0.0
    %519 = vmatprep.subr.mxu0 0.0
    %520 = vmatpush1.msra.mxu0 0.0
    %521 = vmatprep.subr.mxu0 0.0
    %522 = vmatpush1.msra.mxu0 0.0
    %523 = vmatprep.subr.mxu0 0.0
    %524 = vmatpush1.msra.mxu0 0.0
    %525 = vmatprep.subr.mxu0 0.0
    %526 = vmatpush1.msra.mxu0 0.0
    %527 = vmatprep.subr.mxu0 0.0
    %528 = vmatpush1.msra.mxu0 0.0
    %529 = vmatprep.subr.mxu0 0.0
    %530 = vmatpush1.msra.mxu0 0.0
    %531 = vmatprep.subr.mxu0 0.0
    %532 = vmatpush1.msra.mxu0 0.0
    %533 = vmatprep.subr.mxu0 0.0
    %534 = vmatpush1.msra.mxu0 0.0
    %535 = vmatprep.subr.mxu0 0.0
    %536 = vmatpush1.msra.mxu0 0.0
    %537 = vmatprep.subr.mxu0 0.0
    %538 = vmatpush1.msra.mxu0 0.0
    %539 = vmatprep.subr.mxu0 0.0
    %540 = vmatpush1.msra.mxu0 0.0
    %541 = vmatprep.mubr.f32.mxu0 0.0
    %542 = vmatmul.mubr.f32.gmra.mrb[0].mxu0 %v469
    %v543 = vpop.f32.mrb[0].mxu0
    %v544 = vadd.f32 0.0, %v543
    %v545 = vpop.f32.mrb[0].mxu0
    %546 = vmatprep.mubr.f32.mxu0 0.0
    %547 = vmatmul.mubr.f32.gmra.mrb[0].mxu0 %v472
    %v548 = vpop.f32.mrb[0].mxu0
    %v549 = vadd.f32 0.0, %v548
    %v550 = vpop.f32.mrb[0].mxu0
    %551 = vmatprep.mubr.f32.mxu0 0.0
    %552 = vmatmul.mubr.f32.gmra.mrb[0].mxu0 %v475
    %v553 = vpop.f32.mrb[0].mxu0
    %v554 = vadd.f32 0.0, %v553
    %v555 = vpop.f32.mrb[0].mxu0
    %556 = vdwg.mxu0
    %558 = vrot.lane.b32.xlu0 %v549, 32
    %v559 = vpop.permute.xlu0 %558
    %562 = vrot.lane.b32.xlu0 %v554, 64
    %v563 = vpop.permute.xlu0 %562
    %v565 = vsel %vm214, %v544, %v559
    %v566 = vsel %vm58, %v565, %v563
    %v567 = vld [vmem:[%s1 + $0x1b0] sm:$0xff]
    %v568 = vld [vmem:[%s1 + $0x1b8] sm:$0xff]
    %v569 = vld [vmem:[%s1 + $0x1c0] sm:$0xff]
    %v570 = vld [vmem:[%s1 + $0x1c8] sm:$0xff]
    %v571 = vld [vmem:[%s1 + $0x1d0] sm:$0xff]
    %v572 = vld [vmem:[%s1 + $0x1d8] sm:$0xff]
    %v573 = vld [vmem:[%s1 + $0x1e0] sm:$0xff]
    %v574 = vld [vmem:[%s1 + $0x1e8] sm:$0xff]
    %v575 = vld [vmem:[%s1 + $0x1f0] sm:$0xff]
    %v576 = vld [vmem:[%s1 + $0x1f8] sm:$0xff]
    %v577 = vld [vmem:[%s1 + $0x200] sm:$0xff]
    %v578 = vld [vmem:[%s1 + $0x208] sm:$0xff]
    %v579 = vld [vmem:[%s2 + $0x6] sm:$0x1]
    %v580 = vlaneseq
    %v581 = vshrl.u32 %v580, 7
    %v582 = vsub.s32 0, %v581
    %v583 = vrot.slane %v579, %v582
    %vm584 = vcmask 785408
    %v586 = vsel %vm584, %v566, 0
    %588 = vmatprep.subr.mxu0 0.0
    %589 = vmatpush1.msra.mxu0 %v567
    %590 = vmatprep.subr.mxu0 0.0
    %591 = vmatpush1.msra.mxu0 %v568
    %592 = vmatprep.subr.mxu0 0.0
    %593 = vmatpush1.msra.mxu0 %v569
    %594 = vmatprep.subr.mxu0 0.0
    %595 = vmatpush1.msra.mxu0 %v570
    %596 = vmatprep.subr.mxu0 0.0
    %597 = vmatpush1.msra.mxu0 %v571
    %598 = vmatprep.subr.mxu0 0.0
    %599 = vmatpush1.msra.mxu0 %v572
    %600 = vmatprep.subr.mxu0 0.0
    %601 = vmatpush1.msra.mxu0 %v573
    %602 = vmatprep.subr.mxu0 0.0
    %603 = vmatpush1.msra.mxu0 %v574
    %604 = vmatprep.subr.mxu0 0.0
    %605 = vmatpush1.msra.mxu0 %v575
    %606 = vmatprep.subr.mxu0 0.0
    %607 = vmatpush1.msra.mxu0 %v576
    %608 = vmatprep.subr.mxu0 0.0
    %609 = vmatpush1.msra.mxu0 %v577
    %610 = vmatprep.subr.mxu0 0.0
    %611 = vmatpush1.msra.mxu0 %v578
    %612 = vmatprep.subr.mxu0 0.0
    %613 = vmatpush1.msra.mxu0 0.0
    %614 = vmatprep.subr.mxu0 0.0
    %615 = vmatpush1.msra.mxu0 0.0
    %616 = vmatprep.subr.mxu0 0.0
    %617 = vmatpush1.msra.mxu0 0.0
    %618 = vmatprep.subr.mxu0 0.0
    %619 = vmatpush1.msra.mxu0 0.0
    %620 = vmatprep.subr.mxu0 0.0
    %621 = vmatpush1.msra.mxu0 0.0
    %622 = vmatprep.subr.mxu0 0.0
    %623 = vmatpush1.msra.mxu0 0.0
    %624 = vmatprep.subr.mxu0 0.0
    %625 = vmatpush1.msra.mxu0 0.0
    %626 = vmatprep.subr.mxu0 0.0
    %627 = vmatpush1.msra.mxu0 0.0
    %628 = vmatprep.subr.mxu0 0.0
    %629 = vmatpush1.msra.mxu0 0.0
    %630 = vmatprep.subr.mxu0 0.0
    %631 = vmatpush1.msra.mxu0 0.0
    %632 = vmatprep.subr.mxu0 0.0
    %633 = vmatpush1.msra.mxu0 0.0
    %634 = vmatprep.subr.mxu0 0.0
    %635 = vmatpush1.msra.mxu0 0.0
    %636 = vmatprep.subr.mxu0 0.0
    %637 = vmatpush1.msra.mxu0 0.0
    %638 = vmatprep.subr.mxu0 0.0
    %639 = vmatpush1.msra.mxu0 0.0
    %640 = vmatprep.subr.mxu0 0.0
    %641 = vmatpush1.msra.mxu0 0.0
    %642 = vmatprep.subr.mxu0 0.0
    %643 = vmatpush1.msra.mxu0 0.0
    %644 = vmatprep.subr.mxu0 0.0
    %645 = vmatpush1.msra.mxu0 0.0
    %646 = vmatprep.subr.mxu0 0.0
    %647 = vmatpush1.msra.mxu0 0.0
    %648 = vmatprep.subr.mxu0 0.0
    %649 = vmatpush1.msra.mxu0 0.0
    %650 = vmatprep.subr.mxu0 0.0
    %651 = vmatpush1.msra.mxu0 0.0
    %652 = vmatprep.mubr.f32.mxu0 0.0
    %653 = vmatmul.mubr.f32.gmra.mrb[0].mxu0 %v586
    %v654 = vpop.f32.mrb[0].mxu0
    %v655 = vadd.f32 %v583, %v654
    %v656 = vpop.f32.mrb[0].mxu0
    %657 = vdwg.mxu0
    %v658 = vmax.f32 %v655, 0.0
    %v659 = vld [vmem:[%s2 + $0x7] sm:$0x1]
    %v660 = vlaneseq
    %v661 = vshrl.u32 %v660, 7
    %v662 = vsub.s32 0, %v661
    %v663 = vrot.slane %v659, %v662
    %v664 = vmul.f32 %v658, %v663
    %v665 = vld [vmem:[%s2 + $0x8] sm:$0x1]
    %v666 = vlaneseq
    %v667 = vshrl.u32 %v666, 7
    %v668 = vsub.s32 0, %v667
    %v669 = vrot.slane %v665, %v668
    %v670 = vadd.f32 %v664, %v669
    %v671 = vld [vmem:[%s1 + $0x258] sm:$0xff]
    %v672 = vld [vmem:[%s1 + $0x260] sm:$0xf]
    %vm673 = vcmask 64512
    %v675 = vsel %vm673, %v671, 0
    %v678 = vsel %vm673, %v672, 0
    %680 = vmatprep.subr.mxu0 0.0
    %681 = vmatpush1.msra.mxu0 %v670
    %682 = vmatprep.subr.mxu0 0.0
    %683 = vmatpush1.msra.mxu0 0.0
    %684 = vmatprep.subr.mxu0 0.0
    %685 = vmatpush1.msra.mxu0 0.0
    %686 = vmatprep.subr.mxu0 0.0
    %687 = vmatpush1.msra.mxu0 0.0
    %688 = vmatprep.subr.mxu0 0.0
    %689 = vmatpush1.msra.mxu0 0.0
    %690 = vmatprep.subr.mxu0 0.0
    %691 = vmatpush1.msra.mxu0 0.0
    %692 = vmatprep.subr.mxu0 0.0
    %693 = vmatpush1.msra.mxu0 0.0
    %694 = vmatprep.subr.mxu0 0.0
    %695 = vmatpush1.msra.mxu0 0.0
    %696 = vmatprep.subr.mxu0 0.0
    %697 = vmatpush1.msra.mxu0 0.0
    %698 = vmatprep.subr.mxu0 0.0
    %699 = vmatpush1.msra.mxu0 0.0
    %700 = vmatprep.subr.mxu0 0.0
    %701 = vmatpush1.msra.mxu0 0.0
    %702 = vmatprep.subr.mxu0 0.0
    %703 = vmatpush1.msra.mxu0 0.0
    %704 = vmatprep.subr.mxu0 0.0
    %705 = vmatpush1.msra.mxu0 0.0
    %706 = vmatprep.subr.mxu0 0.0
    %707 = vmatpush1.msra.mxu0 0.0
    %708 = vmatprep.subr.mxu0 0.0
    %709 = vmatpush1.msra.mxu0 0.0
    %710 = vmatprep.subr.mxu0 0.0
    %711 = vmatpush1.msra.mxu0 0.0
    %712 = vmatprep.subr.mxu0 0.0
    %713 = vmatpush1.msra.mxu0 0.0
    %714 = vmatprep.subr.mxu0 0.0
    %715 = vmatpush1.msra.mxu0 0.0
    %716 = vmatprep.subr.mxu0 0.0
    %717 = vmatpush1.msra.mxu0 0.0
    %718 = vmatprep.subr.mxu0 0.0
    %719 = vmatpush1.msra.mxu0 0.0
    %720 = vmatprep.subr.mxu0 0.0
    %721 = vmatpush1.msra.mxu0 0.0
    %722 = vmatprep.subr.mxu0 0.0
    %723 = vmatpush1.msra.mxu0 0.0
    %724 = vmatprep.subr.mxu0 0.0
    %725 = vmatpush1.msra.mxu0 0.0
    %726 = vmatprep.subr.mxu0 0.0
    %727 = vmatpush1.msra.mxu0 0.0
    %728 = vmatprep.subr.mxu0 0.0
    %729 = vmatpush1.msra.mxu0 0.0
    %730 = vmatprep.subr.mxu0 0.0
    %731 = vmatpush1.msra.mxu0 0.0
    %732 = vmatprep.subr.mxu0 0.0
    %733 = vmatpush1.msra.mxu0 0.0
    %734 = vmatprep.subr.mxu0 0.0
    %735 = vmatpush1.msra.mxu0 0.0
    %736 = vmatprep.subr.mxu0 0.0
    %737 = vmatpush1.msra.mxu0 0.0
    %738 = vmatprep.subr.mxu0 0.0
    %739 = vmatpush1.msra.mxu0 0.0
    %740 = vmatprep.subr.mxu0 0.0
    %741 = vmatpush1.msra.mxu0 0.0
    %742 = vmatprep.subr.mxu0 0.0
    %743 = vmatpush1.msra.mxu0 0.0
    %744 = vmatprep.mubr.f32.mxu0 0.0
    %745 = vmatmul.mubr.f32.gmra.mrb[0].mxu0 %v675
    %v746 = vpop.f32.mrb[0].mxu0
    %v747 = vadd.f32 0.0, %v746
    %v748 = vpop.f32.mrb[0].mxu0
    %749 = vmatprep.mubr.f32.mxu0 0.0
    %750 = vmatmul.mubr.f32.gmra.mrb[0].mxu0 %v678
    %v751 = vpop.f32.mrb[0].mxu0
    %v752 = vadd.f32 0.0, %v751
    %v753 = vpop.f32.mrb[0].mxu0
    %754 = vdwg.mxu0
    %v756 = vrot.slane %v747, 4
    %757 = vrot.lane.b32.xlu0 %v756, 16
    %v758 = vpop.permute.xlu0 %757
    %761 = vrot.lane.b32.xlu0 %v752, 32
    %v762 = vpop.permute.xlu0 %761
    %v764 = vsel %vm467, %v747, %v758
    %v765 = vsel %vm214, %v764, %v762
    %v766 = vld [vmem:[%s1 + $0x228] sm:$0xff]
    %v767 = vld [vmem:[%s1 + $0x230] sm:$0xff]
    %v768 = vld [vmem:[%s1 + $0x238] sm:$0xff]
    %v769 = vld [vmem:[%s1 + $0x240] sm:$0xff]
    %v770 = vld [vmem:[%s1 + $0x248] sm:$0xff]
    %v771 = vld [vmem:[%s1 + $0x250] sm:$0xff]
    %v772 = vld [vmem:[%s2 + $0x9] sm:$0x1]
    %v773 = vlaneseq
    %v774 = vshrl.u32 %v773, 7
    %v775 = vsub.s32 0, %v774
    %v776 = vrot.slane %v772, %v775
    %vm777 = vcmask 392192
    %v779 = vsel %vm777, %v765, 0
    %781 = vmatprep.subr.mxu0 0.0
    %782 = vmatpush1.msra.mxu0 %v766
    %783 = vmatprep.subr.mxu0 0.0
    %784 = vmatpush1.msra.mxu0 %v767
    %785 = vmatprep.subr.mxu0 0.0
    %786 = vmatpush1.msra.mxu0 %v768
    %787 = vmatprep.subr.mxu0 0.0
    %788 = vmatpush1.msra.mxu0 %v769
    %789 = vmatprep.subr.mxu0 0.0
    %790 = vmatpush1.msra.mxu0 %v770
    %791 = vmatprep.subr.mxu0 0.0
    %792 = vmatpush1.msra.mxu0 %v771
    %793 = vmatprep.subr.mxu0 0.0
    %794 = vmatpush1.msra.mxu0 0.0
    %795 = vmatprep.subr.mxu0 0.0
    %796 = vmatpush1.msra.mxu0 0.0
    %797 = vmatprep.subr.mxu0 0.0
    %798 = vmatpush1.msra.mxu0 0.0
    %799 = vmatprep.subr.mxu0 0.0
    %800 = vmatpush1.msra.mxu0 0.0
    %801 = vmatprep.subr.mxu0 0.0
    %802 = vmatpush1.msra.mxu0 0.0
    %803 = vmatprep.subr.mxu0 0.0
    %804 = vmatpush1.msra.mxu0 0.0
    %805 = vmatprep.subr.mxu0 0.0
    %806 = vmatpush1.msra.mxu0 0.0
    %807 = vmatprep.subr.mxu0 0.0
    %808 = vmatpush1.msra.mxu0 0.0
    %809 = vmatprep.subr.mxu0 0.0
    %810 = vmatpush1.msra.mxu0 0.0
    %811 = vmatprep.subr.mxu0 0.0
    %812 = vmatpush1.msra.mxu0 0.0
    %813 = vmatprep.subr.mxu0 0.0
    %814 = vmatpush1.msra.mxu0 0.0
    %815 = vmatprep.subr.mxu0 0.0
    %816 = vmatpush1.msra.mxu0 0.0
    %817 = vmatprep.subr.mxu0 0.0
    %818 = vmatpush1.msra.mxu0 0.0
    %819 = vmatprep.subr.mxu0 0.0
    %820 = vmatpush1.msra.mxu0 0.0
    %821 = vmatprep.subr.mxu0 0.0
    %822 = vmatpush1.msra.mxu0 0.0
    %823 = vmatprep.subr.mxu0 0.0
    %824 = vmatpush1.msra.mxu0 0.0
    %825 = vmatprep.subr.mxu0 0.0
    %826 = vmatpush1.msra.mxu0 0.0
    %827 = vmatprep.subr.mxu0 0.0
    %828 = vmatpush1.msra.mxu0 0.0
    %829 = vmatprep.subr.mxu0 0.0
    %830 = vmatpush1.msra.mxu0 0.0
    %831 = vmatprep.subr.mxu0 0.0
    %832 = vmatpush1.msra.mxu0 0.0
    %833 = vmatprep.subr.mxu0 0.0
    %834 = vmatpush1.msra.mxu0 0.0
    %835 = vmatprep.subr.mxu0 0.0
    %836 = vmatpush1.msra.mxu0 0.0
    %837 = vmatprep.subr.mxu0 0.0
    %838 = vmatpush1.msra.mxu0 0.0
    %839 = vmatprep.subr.mxu0 0.0
    %840 = vmatpush1.msra.mxu0 0.0
    %841 = vmatprep.subr.mxu0 0.0
    %842 = vmatpush1.msra.mxu0 0.0
    %843 = vmatprep.subr.mxu0 0.0
    %844 = vmatpush1.msra.mxu0 0.0
    %845 = vmatprep.mubr.f32.mxu0 0.0
    %846 = vmatmul.mubr.f32.gmra.mrb[0].mxu0 %v779
    %v847 = vpop.f32.mrb[0].mxu0
    %v848 = vadd.f32 %v776, %v847
    %v849 = vpop.f32.mrb[0].mxu0
    %850 = vdwg.mxu0
    %v851 = vmax.f32 %v848, 0.0
    %v853 = vrot.slane %v851, 2
    %854 = vrot.lane.b32.xlu0 %v853, 8
    %v855 = vpop.permute.xlu0 %854
    %v857 = vsel %vm673, %v851, %v855
    %v858 = vld [vmem:[%s1 + $0x268] sm:$0xff]
    %v859 = vld [vmem:[%s1 + $0x270] sm:$0xff]
    %v860 = vld [vmem:[%s2 + $0xa] sm:$0x1]
    %v861 = vlaneseq
    %v862 = vshrl.u32 %v861, 7
    %v863 = vsub.s32 0, %v862
    %v864 = vrot.slane %v860, %v863
    %v866 = vsel %vm467, %v857, 0
    %868 = vmatprep.subr.mxu0 0.0
    %869 = vmatpush1.msra.mxu0 %v858
    %870 = vmatprep.subr.mxu0 0.0
    %871 = vmatpush1.msra.mxu0 %v859
    %872 = vmatprep.subr.mxu0 0.0
    %873 = vmatpush1.msra.mxu0 0.0
    %874 = vmatprep.subr.mxu0 0.0
    %875 = vmatpush1.msra.mxu0 0.0
    %876 = vmatprep.subr.mxu0 0.0
    %877 = vmatpush1.msra.mxu0 0.0
    %878 = vmatprep.subr.mxu0 0.0
    %879 = vmatpush1.msra.mxu0 0.0
    %880 = vmatprep.subr.mxu0 0.0
    %881 = vmatpush1.msra.mxu0 0.0
    %882 = vmatprep.subr.mxu0 0.0
    %883 = vmatpush1.msra.mxu0 0.0
    %884 = vmatprep.subr.mxu0 0.0
    %885 = vmatpush1.msra.mxu0 0.0
    %886 = vmatprep.subr.mxu0 0.0
    %887 = vmatpush1.msra.mxu0 0.0
    %888 = vmatprep.subr.mxu0 0.0
    %889 = vmatpush1.msra.mxu0 0.0
    %890 = vmatprep.subr.mxu0 0.0
    %891 = vmatpush1.msra.mxu0 0.0
    %892 = vmatprep.subr.mxu0 0.0
    %893 = vmatpush1.msra.mxu0 0.0
    %894 = vmatprep.subr.mxu0 0.0
    %895 = vmatpush1.msra.mxu0 0.0
    %896 = vmatprep.subr.mxu0 0.0
    %897 = vmatpush1.msra.mxu0 0.0
    %898 = vmatprep.subr.mxu0 0.0
    %899 = vmatpush1.msra.mxu0 0.0
    %900 = vmatprep.subr.mxu0 0.0
    %901 = vmatpush1.msra.mxu0 0.0
    %902 = vmatprep.subr.mxu0 0.0
    %903 = vmatpush1.msra.mxu0 0.0
    %904 = vmatprep.subr.mxu0 0.0
    %905 = vmatpush1.msra.mxu0 0.0
    %906 = vmatprep.subr.mxu0 0.0
    %907 = vmatpush1.msra.mxu0 0.0
    %908 = vmatprep.subr.mxu0 0.0
    %909 = vmatpush1.msra.mxu0 0.0
    %910 = vmatprep.subr.mxu0 0.0
    %911 = vmatpush1.msra.mxu0 0.0
    %912 = vmatprep.subr.mxu0 0.0
    %913 = vmatpush1.msra.mxu0 0.0
    %914 = vmatprep.subr.mxu0 0.0
    %915 = vmatpush1.msra.mxu0 0.0
    %916 = vmatprep.subr.mxu0 0.0
    %917 = vmatpush1.msra.mxu0 0.0
    %918 = vmatprep.subr.mxu0 0.0
    %919 = vmatpush1.msra.mxu0 0.0
    %920 = vmatprep.subr.mxu0 0.0
    %921 = vmatpush1.msra.mxu0 0.0
    %922 = vmatprep.subr.mxu0 0.0
    %923 = vmatpush1.msra.mxu0 0.0
    %924 = vmatprep.subr.mxu0 0.0
    %925 = vmatpush1.msra.mxu0 0.0
    %926 = vmatprep.subr.mxu0 0.0
    %927 = vmatpush1.msra.mxu0 0.0
    %928 = vmatprep.subr.mxu0 0.0
    %929 = vmatpush1.msra.mxu0 0.0
    %930 = vmatprep.subr.mxu0 0.0
    %931 = vmatpush1.msra.mxu0 0.0
    %932 = vmatprep.mubr.f32.mxu0 0.0
    %933 = vmatmul.mubr.f32.gmra.mrb[0].mxu0 %v866
    %v934 = vpop.f32.mrb[0].mxu0
    %v935 = vadd.f32 %v864, %v934
    %v936 = vpop.f32.mrb[0].mxu0
    %937 = vdwg.mxu0
    %vm938 = vcmask 74752
    %939 = vst.msk [vmem:[#allocation2] sm:$0x3] %vm938, %v935
    // Predicated region
    $region14: #{cnn_block_forward.1} parent=1 // pred_check
      _
    $region15: #{cnn_block_forward.1} parent=1 // pred_check_branch
      %941 = sbr.rel (0) target = $region17
    $region16: #{cnn_block_forward.1} parent=1 // pred_region
      %s943 = ssub.s32 32, 32
      %944 = vsyncadd [#allocation3], %s943
      %s946 = sshll.u32 [#allocation2], 4
      %s947 = int_to_ptr.vmem [resolvable:$true] %s946
      %949 = dma.vmem_to_hbm [thread:$0]  %s947, 32, %s3, [#allocation3]
    $region17: #{cnn_block_forward.1} parent=1 // pred_fallthru
      _
    // Predicated region
    $region18: #{cnn_block_forward.1} parent=1 // pred_check
      _
    $region19: #{cnn_block_forward.1} parent=1 // pred_check_branch
      %951 = sbr.rel (0) target = $region21
    $region20: #{cnn_block_forward.1} parent=1 // pred_region
      %952 = dma.done [#allocation3], 32
    $region21: #{cnn_block_forward.1} parent=1 // pred_fallthru
      _
    %953 = vsyncpa [#allocation3], 1

</llo_original>
